<compile_context>
chip_gen: v6e
topology: v6e:2x2x1
jax: 0.10.0
libtpu: 0.0.40
codegen_flags: <defaults>
</compile_context>

<pallas_src>
import functools
import math

import jax
import jax.numpy as jnp
import numpy as np
from jax import lax
from jax.experimental import pallas as pl
from jax.experimental.pallas import tpu as pltpu


def _round_up(x, m):
    return ((x + m - 1) // m) * m


def _predict_features_kernel(x_ref, w1_ref, b1_ref, w2_ref, b2_ref,
                             logits_ref, argmax_ref, *, P, Bpad, Cout, C):
    # x_ref:      (Bpad, Dpad)        zero-padded input rows
    # w1_ref:     (Dpad, PHpad)       all first-layer weights, concatenated on lanes (zero pad)
    # b1_ref:     (1, PHpad)
    # w2_ref:     (PHpad, P*Cout)     block-diagonal second-layer weights, lane-aligned blocks
    # b2_ref:     (1, P*Cout)
    # logits_ref: (P*Bpad, Cout)      logits in torch.cat(dim=0) row order (padded rows/lanes)
    # argmax_ref: (P*Bpad, 1) int32   per-row argmax over the C valid classes
    x = x_ref[...]

    # Hidden layer for all P predictors in one MXU pass: (Bpad, PHpad)
    h = jnp.dot(x, w1_ref[...], preferred_element_type=jnp.float32) + b1_ref[...]
    h = jax.nn.sigmoid(h)

    # Output layer for all P predictors via block-diagonal W2: (Bpad, P*Cout)
    z = jnp.dot(h, w2_ref[...], preferred_element_type=jnp.float32) + b2_ref[...]

    # Lane iota / validity mask hoisted out of the (static, tiny) P loop.
    lane = lax.broadcasted_iota(jnp.int32, (Bpad, Cout), 1)
    valid = lane < C

    for p in range(P):  # static unroll; P is small
        zp = z[:, p * Cout:(p + 1) * Cout]                       # lane-aligned slice
        logits_ref[pl.ds(p * Bpad, Bpad), :] = zp.astype(logits_ref.dtype)

        zm = jnp.where(valid, zp, -jnp.inf)
        m = jnp.max(zm, axis=1, keepdims=True)
        # First-max tie-breaking (matches torch.argmax / jnp.argmax): min index where == max.
        idx = jnp.min(jnp.where(zm == m, lane, Cout), axis=1, keepdims=True)
        argmax_ref[pl.ds(p * Bpad, Bpad), :] = idx.astype(jnp.int32)


def make_predict_features(w1, b1, w2, b2, batch_size):
    """Precompute padded weight slabs once and return a jitted forward function.

    w1: (P, D, H), b1: (P, H), w2: (P, H, C), b2: (P, C)
    Returned fwd(e_input:(B,D)) -> (feature_logits:(P*B,C) f32, numeral_values:(1,P*B) i32)
    """
    w1 = np.asarray(w1, np.float32)
    b1 = np.asarray(b1, np.float32)
    w2 = np.asarray(w2, np.float32)
    b2 = np.asarray(b2, np.float32)

    P, D, H = w1.shape
    C = w2.shape[2]
    B = int(batch_size)

    # Hardware-tile padding (f32 min tile is (8, 128)); all padding is zeros (numerically inert).
    Bpad = _round_up(max(B, 8), 8)
    Dpad = _round_up(max(D, 128), 128)
    PH = P * H
    PHpad = _round_up(max(PH, 128), 128)
    Cout = _round_up(max(C, 128), 128)     # per-predictor lane-aligned class block

    # ---- one-time weight restructuring (numpy, outside the hot path) ----
    w1_cat_np = np.zeros((Dpad, PHpad), np.float32)
    w1_cat_np[:D, :PH] = np.transpose(w1, (1, 0, 2)).reshape(D, PH)
    b1_row_np = np.zeros((1, PHpad), np.float32)
    b1_row_np[0, :PH] = b1.reshape(PH)

    w2_blk_np = np.zeros((PHpad, P * Cout), np.float32)
    b2_row_np = np.zeros((1, P * Cout), np.float32)
    for p in range(P):
        w2_blk_np[p * H:(p + 1) * H, p * Cout:p * Cout + C] = w2[p]
        b2_row_np[0, p * Cout:p * Cout + C] = b2[p]

    w1_cat = jnp.asarray(w1_cat_np)
    b1_row = jnp.asarray(b1_row_np)
    w2_blk = jnp.asarray(w2_blk_np)
    b2_row = jnp.asarray(b2_row_np)

    kernel = functools.partial(_predict_features_kernel,
                               P=P, Bpad=Bpad, Cout=Cout, C=C)

    # Gridless call: full-array blocks, explicitly pinned to VMEM; no pipeline machinery.
    call = pl.pallas_call(
        kernel,
        out_shape=(
            jax.ShapeDtypeStruct((P * Bpad, Cout), jnp.float32),
            jax.ShapeDtypeStruct((P * Bpad, 1), jnp.int32),
        ),
        in_specs=[pl.BlockSpec(memory_space=pltpu.MemorySpace.VMEM) for _ in range(5)],
        out_specs=(
            pl.BlockSpec(memory_space=pltpu.MemorySpace.VMEM),
            pl.BlockSpec(memory_space=pltpu.MemorySpace.VMEM),
        ),
    )

    @jax.jit
    def fwd(e_input):
        # Zero-pad input to (Bpad, Dpad); padded rows/cols contribute nothing to valid outputs.
        x = jnp.pad(e_input.astype(jnp.float32), ((0, Bpad - B), (0, Dpad - D)))
        logits_slab, argmax_slab = call(x, w1_cat, b1_row, w2_blk, b2_row)
        # Kernel already wrote rows in torch.cat(dim=0) order; drop padded rows/lanes only.
        feature_logits = (
            logits_slab.reshape(P, Bpad, Cout)[:, :B, :C].reshape(P * B, C)
        )
        numeral_values = argmax_slab.reshape(P, Bpad)[:, :B].reshape(1, P * B)
        return feature_logits, numeral_values

    return fwd


def _init_params(key, P, D, H, C):
    """Deterministic PyTorch-Linear-style init (uniform in +/- 1/sqrt(fan_in))."""
    keys = jax.random.split(key, 4)
    lim1 = 1.0 / math.sqrt(D)
    lim2 = 1.0 / math.sqrt(H)
    w1 = jax.random.uniform(keys[0], (P, D, H), jnp.float32, -lim1, lim1)
    b1 = jax.random.uniform(keys[1], (P, H), jnp.float32, -lim1, lim1)
    w2 = jax.random.uniform(keys[2], (P, H, C), jnp.float32, -lim2, lim2)
    b2 = jax.random.uniform(keys[3], (P, C), jnp.float32, -lim2, lim2)
    return w1, b1, w2, b2


def _reference(e_input, w1, b1, w2, b2):
    """Pure-JAX reference mirroring the PyTorch forward (per-predictor MLPs + cat + argmax)."""
    P = w1.shape[0]
    outs = []
    for p in range(P):
        h = jax.nn.sigmoid(e_input @ w1[p] + b1[p])
        outs.append(h @ w2[p] + b2[p])
    logits = jnp.concatenate(outs, axis=0)
    vals = jnp.argmax(logits, axis=1).astype(jnp.int32).reshape(1, -1)
    return logits, vals


if __name__ == "__main__":
    # Module hyperparameters (small, consistent with the forward pass):
    graph_embed_hidden_size = 32
    node_hidden_size = 16
    num_edge_feature_classes_list = [8, 8, 8]   # equal counts required by torch.cat(dim=0)

    D = graph_embed_hidden_size + 2 * node_hidden_size        # 64
    H = D // 2                                                 # 32
    P = len(num_edge_feature_classes_list)                     # 3
    C = num_edge_feature_classes_list[0]                       # 8
    B = 2                                                      # batch of edge-input vectors

    key = jax.random.PRNGKey(0)
    k_in, k_par = jax.random.split(key)
    e_input = jax.random.normal(k_in, (B, D), jnp.float32)
    w1, b1, w2, b2 = _init_params(k_par, P, D, H, C)

    # One-time setup (weight restructuring + jit closure); hot path is just fwd(e_input).
    fwd = make_predict_features(w1, b1, w2, b2, batch_size=B)

    feature_logits, numeral_values = fwd(e_input)
    jax.block_until_ready(feature_logits)
    jax.block_until_ready(numeral_values)

    ref_logits, ref_vals = _reference(e_input, w1, b1, w2, b2)
    np.testing.assert_allclose(np.asarray(feature_logits), np.asarray(ref_logits),
                               rtol=1e-5, atol=1e-5)
    np.testing.assert_array_equal(np.asarray(numeral_values), np.asarray(ref_vals))

    assert feature_logits.shape == (P * B, C)
    assert numeral_values.shape == (1, P * B)
    print("KERNEL_OK")
</pallas_src>

<mosaic_0001>
module attributes {stable_mosaic.version = 11 : i64} {
  func.func @_predict_features_kernel(%arg0: memref<8x128xf32, #tpu.memory_space<vmem>>, %arg1: memref<128x128xf32, #tpu.memory_space<vmem>>, %arg2: memref<1x128xf32, #tpu.memory_space<vmem>>, %arg3: memref<128x384xf32, #tpu.memory_space<vmem>>, %arg4: memref<1x384xf32, #tpu.memory_space<vmem>>, %arg5: memref<24x128xf32, #tpu.memory_space<vmem>>, %arg6: memref<24x1xi32, #tpu.memory_space<vmem>>) attributes {dimension_semantics = [], scalar_prefetch = 0 : i64, scratch_operands = 0 : i64, tpu.core_type = #tpu.core_type<tc>} {
    %c0 = arith.constant 0 : index
    %c0_0 = arith.constant 0 : index
    %0 = vector.load %arg0[%c0, %c0_0] : memref<8x128xf32, #tpu.memory_space<vmem>>, vector<8x128xf32>
    %c0_1 = arith.constant 0 : index
    %c0_2 = arith.constant 0 : index
    %1 = vector.load %arg1[%c0_1, %c0_2] : memref<128x128xf32, #tpu.memory_space<vmem>>, vector<128x128xf32>
    %cst = arith.constant dense<0.000000e+00> : vector<8x128xf32>
    %2 = tpu.matmul %0, %1, %cst {dimension_numbers = #tpu.dot_dimension_numbers<[1], [0], [0], [1], [0, 0, 1, 1], [], []>} : vector<8x128xf32>, vector<128x128xf32>, vector<8x128xf32> -> vector<8x128xf32>
    %c0_3 = arith.constant 0 : index
    %c0_4 = arith.constant 0 : index
    %3 = vector.load %arg2[%c0_3, %c0_4] : memref<1x128xf32, #tpu.memory_space<vmem>>, vector<1x128xf32>
    %4 = vector.broadcast %3 : vector<1x128xf32> to vector<8x128xf32>
    %5 = arith.addf %2, %4 : vector<8x128xf32>
    %6 = arith.negf %5 : vector<8x128xf32>
    %7 = math.exp %6 : vector<8x128xf32>
    %cst_5 = arith.constant 1.000000e+00 : f32
    %8 = vector.broadcast %cst_5 : f32 to vector<8x128xf32>
    %9 = arith.addf %8, %7 : vector<8x128xf32>
    %10 = arith.divf %8, %9 : vector<8x128xf32>
    %c0_6 = arith.constant 0 : index
    %c0_7 = arith.constant 0 : index
    %11 = vector.load %arg3[%c0_6, %c0_7] : memref<128x384xf32, #tpu.memory_space<vmem>>, vector<128x384xf32>
    %cst_8 = arith.constant dense<0.000000e+00> : vector<8x384xf32>
    %12 = tpu.matmul %10, %11, %cst_8 {dimension_numbers = #tpu.dot_dimension_numbers<[1], [0], [0], [1], [0, 0, 1, 1], [], []>} : vector<8x128xf32>, vector<128x384xf32>, vector<8x384xf32> -> vector<8x384xf32>
    %c0_9 = arith.constant 0 : index
    %c0_10 = arith.constant 0 : index
    %13 = vector.load %arg4[%c0_9, %c0_10] : memref<1x384xf32, #tpu.memory_space<vmem>>, vector<1x384xf32>
    %14 = vector.broadcast %13 : vector<1x384xf32> to vector<8x384xf32>
    %15 = arith.addf %12, %14 : vector<8x384xf32>
    %16 = tpu.iota {dimensions = array<i32: 1>} : vector<8x128xi32>
    %c8_i32 = arith.constant 8 : i32
    %17 = vector.broadcast %c8_i32 : i32 to vector<8x128xi32>
    %18 = arith.cmpi slt, %16, %17 : vector<8x128xi32>
    %19 = vector.extract_strided_slice %15 {offsets = [0, 0], sizes = [8, 128], strides = [1, 1]} : vector<8x384xf32> to vector<8x128xf32>
    %c0_11 = arith.constant 0 : index
    %c0_12 = arith.constant 0 : index
    %20 = vector.load %arg5[%c0_11, %c0_12] : memref<24x128xf32, #tpu.memory_space<vmem>>, vector<8x128xf32>
    tpu.vector_store %arg5[%c0_11, %c0_12], %19 {strides = array<i32>} : memref<24x128xf32, #tpu.memory_space<vmem>>, vector<8x128xf32>,
    %cst_13 = arith.constant 0xFF800000 : f32
    %21 = vector.broadcast %cst_13 : f32 to vector<8x128xf32>
    %22 = arith.select %18, %19, %21 : vector<8x128xi1>, vector<8x128xf32>
    %cst_14 = arith.constant dense<0xFF800000> : vector<8xf32>
    %23 = vector.multi_reduction <maximumf>, %22, %cst_14 [1] : vector<8x128xf32> to vector<8xf32>
    %24 = vector.shape_cast %23 : vector<8xf32> to vector<8x1xf32>
    %25 = vector.broadcast %24 : vector<8x1xf32> to vector<8x128xf32>
    %26 = arith.cmpf oeq, %22, %25 : vector<8x128xf32>
    %c128_i32 = arith.constant 128 : i32
    %27 = vector.broadcast %c128_i32 : i32 to vector<8x128xi32>
    %28 = arith.select %26, %16, %27 : vector<8x128xi1>, vector<8x128xi32>
    %cst_15 = arith.constant dense<2147483647> : vector<8xi32>
    %29 = vector.multi_reduction <minsi>, %28, %cst_15 [1] : vector<8x128xi32> to vector<8xi32>
    %30 = vector.shape_cast %29 : vector<8xi32> to vector<8x1xi32>
    %c0_16 = arith.constant 0 : index
    %c0_17 = arith.constant 0 : index
    %31 = vector.load %arg6[%c0_16, %c0_17] : memref<24x1xi32, #tpu.memory_space<vmem>>, vector<8x1xi32>
    tpu.vector_store %arg6[%c0_16, %c0_17], %30 {strides = array<i32>} : memref<24x1xi32, #tpu.memory_space<vmem>>, vector<8x1xi32>,
    %32 = vector.extract_strided_slice %15 {offsets = [0, 128], sizes = [8, 128], strides = [1, 1]} : vector<8x384xf32> to vector<8x128xf32>
    %c8 = arith.constant 8 : index
    %c0_18 = arith.constant 0 : index
    %33 = vector.load %arg5[%c8, %c0_18] : memref<24x128xf32, #tpu.memory_space<vmem>>, vector<8x128xf32>
    tpu.vector_store %arg5[%c8, %c0_18], %32 {strides = array<i32>} : memref<24x128xf32, #tpu.memory_space<vmem>>, vector<8x128xf32>,
    %cst_19 = arith.constant 0xFF800000 : f32
    %34 = vector.broadcast %cst_19 : f32 to vector<8x128xf32>
    %35 = arith.select %18, %32, %34 : vector<8x128xi1>, vector<8x128xf32>
    %cst_20 = arith.constant dense<0xFF800000> : vector<8xf32>
    %36 = vector.multi_reduction <maximumf>, %35, %cst_20 [1] : vector<8x128xf32> to vector<8xf32>
    %37 = vector.shape_cast %36 : vector<8xf32> to vector<8x1xf32>
    %38 = vector.broadcast %37 : vector<8x1xf32> to vector<8x128xf32>
    %39 = arith.cmpf oeq, %35, %38 : vector<8x128xf32>
    %c128_i32_21 = arith.constant 128 : i32
    %40 = vector.broadcast %c128_i32_21 : i32 to vector<8x128xi32>
    %41 = arith.select %39, %16, %40 : vector<8x128xi1>, vector<8x128xi32>
    %cst_22 = arith.constant dense<2147483647> : vector<8xi32>
    %42 = vector.multi_reduction <minsi>, %41, %cst_22 [1] : vector<8x128xi32> to vector<8xi32>
    %43 = vector.shape_cast %42 : vector<8xi32> to vector<8x1xi32>
    %c8_23 = arith.constant 8 : index
    %c0_24 = arith.constant 0 : index
    %44 = vector.load %arg6[%c8_23, %c0_24] : memref<24x1xi32, #tpu.memory_space<vmem>>, vector<8x1xi32>
    tpu.vector_store %arg6[%c8_23, %c0_24], %43 {strides = array<i32>} : memref<24x1xi32, #tpu.memory_space<vmem>>, vector<8x1xi32>,
    %45 = vector.extract_strided_slice %15 {offsets = [0, 256], sizes = [8, 128], strides = [1, 1]} : vector<8x384xf32> to vector<8x128xf32>
    %c16 = arith.constant 16 : index
    %c0_25 = arith.constant 0 : index
    %46 = vector.load %arg5[%c16, %c0_25] : memref<24x128xf32, #tpu.memory_space<vmem>>, vector<8x128xf32>
    tpu.vector_store %arg5[%c16, %c0_25], %45 {strides = array<i32>} : memref<24x128xf32, #tpu.memory_space<vmem>>, vector<8x128xf32>,
    %cst_26 = arith.constant 0xFF800000 : f32
    %47 = vector.broadcast %cst_26 : f32 to vector<8x128xf32>
    %48 = arith.select %18, %45, %47 : vector<8x128xi1>, vector<8x128xf32>
    %cst_27 = arith.constant dense<0xFF800000> : vector<8xf32>
    %49 = vector.multi_reduction <maximumf>, %48, %cst_27 [1] : vector<8x128xf32> to vector<8xf32>
    %50 = vector.shape_cast %49 : vector<8xf32> to vector<8x1xf32>
    %51 = vector.broadcast %50 : vector<8x1xf32> to vector<8x128xf32>
    %52 = arith.cmpf oeq, %48, %51 : vector<8x128xf32>
    %c128_i32_28 = arith.constant 128 : i32
    %53 = vector.broadcast %c128_i32_28 : i32 to vector<8x128xi32>
    %54 = arith.select %52, %16, %53 : vector<8x128xi1>, vector<8x128xi32>
    %cst_29 = arith.constant dense<2147483647> : vector<8xi32>
    %55 = vector.multi_reduction <minsi>, %54, %cst_29 [1] : vector<8x128xi32> to vector<8xi32>
    %56 = vector.shape_cast %55 : vector<8xi32> to vector<8x1xi32>
    %c16_30 = arith.constant 16 : index
    %c0_31 = arith.constant 0 : index
    %57 = vector.load %arg6[%c16_30, %c0_31] : memref<24x1xi32, #tpu.memory_space<vmem>>, vector<8x1xi32>
    tpu.vector_store %arg6[%c16_30, %c0_31], %56 {strides = array<i32>} : memref<24x1xi32, #tpu.memory_space<vmem>>, vector<8x1xi32>,
    return
  }
}

</mosaic_0001>

<llo_original>
// kernel: fwd.1
$region0: #{fwd.1}
  #allocation0 [shape = 'u32[]', space=smem, size = 0x4, offset = 0x4, fixed_abs, tag = 'smem constant byte address 0x4 - core index']
  #allocation1 [shape = 'u32[144,128]{1,0:T(1,128)}', space=vmem, size = 0x12000, scoped, tag = 'internal scratch']
  %s0 = inlined_call_operand.vmem [shape: f32[8,128], index: 0, kind: input, shape index: {}]
  %s1 = inlined_call_operand.hbm [shape: f32[128,128], index: 1, kind: input, shape index: {}]
  %s2 = inlined_call_operand.vmem [shape: f32[1,128], index: 2, kind: input, shape index: {}]
  %s3 = inlined_call_operand.hbm [shape: f32[128,384], index: 3, kind: input, shape index: {}]
  %s4 = inlined_call_operand.vmem [shape: f32[1,384], index: 4, kind: input, shape index: {}]
  %s5 = inlined_call_operand.vmem [shape: f32[24,128], index: 5, kind: output, shape index: {0}]
  %s6 = inlined_call_operand.vmem [shape: s32[24,1], index: 6, kind: output, shape index: {1}]
  %7 = xla_tuple %s5, %s6
  %s8 = sld [smem:[#allocation0]]
  $region46: #{fwd.1} parent=0
    _
  %s10 = ssub.s32 1, %s8
  %s11 = scalar_select 0, %s10, %s8
  $region1: #{fwd.1} parent=0
    #allocation2 [shape = 'u8[65536]{0}', space=vmem, size = 0x10000, scoped, tag = 'input window, operand 1, single buffered']
    #allocation3 [shape = 's32[1]{0}', space=sflag, size = 0x4, scoped, tag = 'scoped memory for fwd.1']
    #allocation4 [shape = 'u8[196608]{0}', space=vmem, size = 0x30000, scoped, tag = 'input window, operand 3, single buffered']
    #allocation5 [shape = 's32[1]{0}', space=sflag, size = 0x4, scoped, tag = 'scoped memory for fwd.1']
    %12 = vsyncpa [#allocation3], 0
    %13 = vsyncpa [#allocation5], 0
    // Predicated region
    $region2: #{fwd.1} parent=1 // pred_check
      _
    $region3: #{fwd.1} parent=1 // pred_check_branch
      %15 = sbr.rel (0) target = $region5
    $region4: #{fwd.1} parent=1 // pred_region
      _
    $region5: #{fwd.1} parent=1 // pred_fallthru
      _
    // Predicated region
    $region6: #{fwd.1} parent=1 // pred_check
      _
    $region7: #{fwd.1} parent=1 // pred_check_branch
      %17 = sbr.rel (0) target = $region9
    $region8: #{fwd.1} parent=1 // pred_region
      %s19 = ssub.s32 2048, 2048
      %20 = vsyncadd [#allocation3], %s19
      %s21 = sshll.u32 [#allocation2], 4
      %s22 = int_to_ptr.vmem [resolvable:$true] %s21
      %27 = dma.hbm_to_vmem [thread:$0]  %s1, 2048, %s22, [#allocation3], 128, 128, 8
    $region9: #{fwd.1} parent=1 // pred_fallthru
      _
    // Predicated region
    $region10: #{fwd.1} parent=1 // pred_check
      _
    $region11: #{fwd.1} parent=1 // pred_check_branch
      %29 = sbr.rel (0) target = $region13
    $region12: #{fwd.1} parent=1 // pred_region
      _
    $region13: #{fwd.1} parent=1 // pred_fallthru
      _
    // Predicated region
    $region14: #{fwd.1} parent=1 // pred_check
      _
    $region15: #{fwd.1} parent=1 // pred_check_branch
      %31 = sbr.rel (0) target = $region17
    $region16: #{fwd.1} parent=1 // pred_region
      %s33 = ssub.s32 6144, 6144
      %34 = vsyncadd [#allocation5], %s33
      %s35 = sshll.u32 [#allocation4], 4
      %s36 = int_to_ptr.vmem [resolvable:$true] %s35
      %41 = dma.hbm_to_vmem [thread:$0]  %s3, 6144, %s36, [#allocation5], 384, 384, 24
    $region17: #{fwd.1} parent=1 // pred_fallthru
      _
    // Predicated region
    $region18: #{fwd.1} parent=1 // pred_check
      _
    $region19: #{fwd.1} parent=1 // pred_check_branch
      %43 = sbr.rel (0) target = $region21
    $region20: #{fwd.1} parent=1 // pred_region
      _
    $region21: #{fwd.1} parent=1 // pred_fallthru
      _
    // Predicated region
    $region22: #{fwd.1} parent=1 // pred_check
      _
    $region23: #{fwd.1} parent=1 // pred_check_branch
      %45 = sbr.rel (0) target = $region25
    $region24: #{fwd.1} parent=1 // pred_region
      %46 = dma.done [#allocation3], 2048
    $region25: #{fwd.1} parent=1 // pred_fallthru
      _
    // Predicated region
    $region26: #{fwd.1} parent=1 // pred_check
      _
    $region27: #{fwd.1} parent=1 // pred_check_branch
      %48 = sbr.rel (0) target = $region29
    $region28: #{fwd.1} parent=1 // pred_region
      %49 = dma.done [#allocation5], 6144
    $region29: #{fwd.1} parent=1 // pred_fallthru
      _
    %v50 = vld [vmem:[%s0] sm:$0xff]
    %v51 = vld [vmem:[#allocation2] sm:$0xff]
    %v52 = vld [vmem:[#allocation2 + $0x8] sm:$0xff]
    %v53 = vld [vmem:[#allocation2 + $0x10] sm:$0xff]
    %v54 = vld [vmem:[#allocation2 + $0x18] sm:$0xff]
    %v55 = vld [vmem:[#allocation2 + $0x20] sm:$0xff]
    %v56 = vld [vmem:[#allocation2 + $0x28] sm:$0xff]
    %v57 = vld [vmem:[#allocation2 + $0x30] sm:$0xff]
    %v58 = vld [vmem:[#allocation2 + $0x38] sm:$0xff]
    %v59 = vld [vmem:[#allocation2 + $0x40] sm:$0xff]
    %v60 = vld [vmem:[#allocation2 + $0x48] sm:$0xff]
    %v61 = vld [vmem:[#allocation2 + $0x50] sm:$0xff]
    %v62 = vld [vmem:[#allocation2 + $0x58] sm:$0xff]
    %v63 = vld [vmem:[#allocation2 + $0x60] sm:$0xff]
    %v64 = vld [vmem:[#allocation2 + $0x68] sm:$0xff]
    %v65 = vld [vmem:[#allocation2 + $0x70] sm:$0xff]
    %v66 = vld [vmem:[#allocation2 + $0x78] sm:$0xff]
    %v67 = vld [vmem:[%s2] sm:$0x1]
    %v69 = vlaneseq
    %v70 = vshrl.u32 %v69, 7
    %v71 = vsub.s32 0, %v70
    %v72 = vrot.slane %v67, %v71
    %74 = vmatprep.subr.mxu0 0.0
    %75 = vmatpush1.msra.mxu0 %v66
    %76 = vmatprep.subr.mxu0 0.0
    %77 = vmatpush1.msra.mxu0 %v65
    %78 = vmatprep.subr.mxu0 0.0
    %79 = vmatpush1.msra.mxu0 %v64
    %80 = vmatprep.subr.mxu0 0.0
    %81 = vmatpush1.msra.mxu0 %v63
    %82 = vmatprep.subr.mxu0 0.0
    %83 = vmatpush1.msra.mxu0 %v62
    %84 = vmatprep.subr.mxu0 0.0
    %85 = vmatpush1.msra.mxu0 %v61
    %86 = vmatprep.subr.mxu0 0.0
    %87 = vmatpush1.msra.mxu0 %v60
    %88 = vmatprep.subr.mxu0 0.0
    %89 = vmatpush1.msra.mxu0 %v59
    %90 = vmatprep.subr.mxu0 0.0
    %91 = vmatpush1.msra.mxu0 %v58
    %92 = vmatprep.subr.mxu0 0.0
    %93 = vmatpush1.msra.mxu0 %v57
    %94 = vmatprep.subr.mxu0 0.0
    %95 = vmatpush1.msra.mxu0 %v56
    %96 = vmatprep.subr.mxu0 0.0
    %97 = vmatpush1.msra.mxu0 %v55
    %98 = vmatprep.subr.mxu0 0.0
    %99 = vmatpush1.msra.mxu0 %v54
    %100 = vmatprep.subr.mxu0 0.0
    %101 = vmatpush1.msra.mxu0 %v53
    %102 = vmatprep.subr.mxu0 0.0
    %103 = vmatpush1.msra.mxu0 %v52
    %104 = vmatprep.subr.mxu0 0.0
    %105 = vmatpush1.msra.mxu0 %v51
    %106 = vmatprep.subr.mxu0 0.0
    %107 = vmatpush2.msra.mxu0 0.0
    %108 = vmatprep.subr.mxu0 0.0
    %109 = vmatpush2.msra.mxu0 0.0
    %110 = vmatprep.subr.mxu0 0.0
    %111 = vmatpush2.msra.mxu0 0.0
    %112 = vmatprep.subr.mxu0 0.0
    %113 = vmatpush2.msra.mxu0 0.0
    %114 = vmatprep.subr.mxu0 0.0
    %115 = vmatpush2.msra.mxu0 0.0
    %116 = vmatprep.subr.mxu0 0.0
    %117 = vmatpush2.msra.mxu0 0.0
    %118 = vmatprep.subr.mxu0 0.0
    %119 = vmatpush2.msra.mxu0 0.0
    %120 = vmatprep.subr.mxu0 0.0
    %121 = vmatpush2.msra.mxu0 0.0
    %122 = vmatprep.subr.mxu0 0.0
    %123 = vmatpush2.msra.mxu0 0.0
    %124 = vmatprep.subr.mxu0 0.0
    %125 = vmatpush2.msra.mxu0 0.0
    %126 = vmatprep.subr.mxu0 0.0
    %127 = vmatpush2.msra.mxu0 0.0
    %128 = vmatprep.subr.mxu0 0.0
    %129 = vmatpush2.msra.mxu0 0.0
    %130 = vmatprep.subr.mxu0 0.0
    %131 = vmatpush2.msra.mxu0 0.0
    %132 = vmatprep.subr.mxu0 0.0
    %133 = vmatpush2.msra.mxu0 0.0
    %134 = vmatprep.subr.mxu0 0.0
    %135 = vmatpush2.msra.mxu0 0.0
    %136 = vmatprep.subr.mxu0 0.0
    %137 = vmatpush2.msra.mxu0 0.0
    %138 = vmatprep.mubr.f32.mxu0 0.0
    %139 = vmatmul.mubr.f32.gmra.mxu0 %v50
    %v140 = vpop.f32.mrf.mxu0
    %v141 = vadd.f32 %v72, %v140
    %v142 = vpop.f32.mrf.mxu0
    %143 = vdwg.mxu0
    %v144 = vxor.u32 %v141, 2147483648
    %v145 = vmul.f32 %v144, 1.442695
    %v146 = vpow.pop %v145
    %v147 = vadd.f32 %v146, 1.0
    %v148 = vrcp.pop %v147
    %v149 = vmul.f32 1.0, %v148
    %v150 = vld [vmem:[#allocation4] sm:$0xff]
    %v151 = vld [vmem:[#allocation4 + $0x8] sm:$0xff]
    %v152 = vld [vmem:[#allocation4 + $0x10] sm:$0xff]
    %v153 = vld [vmem:[#allocation4 + $0x18] sm:$0xff]
    %v154 = vld [vmem:[#allocation4 + $0x20] sm:$0xff]
    %v155 = vld [vmem:[#allocation4 + $0x28] sm:$0xff]
    %v156 = vld [vmem:[#allocation4 + $0x30] sm:$0xff]
    %v157 = vld [vmem:[#allocation4 + $0x38] sm:$0xff]
    %v158 = vld [vmem:[#allocation4 + $0x40] sm:$0xff]
    %v159 = vld [vmem:[#allocation4 + $0x48] sm:$0xff]
    %v160 = vld [vmem:[#allocation4 + $0x50] sm:$0xff]
    %v161 = vld [vmem:[#allocation4 + $0x58] sm:$0xff]
    %v162 = vld [vmem:[#allocation4 + $0x60] sm:$0xff]
    %v163 = vld [vmem:[#allocation4 + $0x68] sm:$0xff]
    %v164 = vld [vmem:[#allocation4 + $0x70] sm:$0xff]
    %v165 = vld [vmem:[#allocation4 + $0x78] sm:$0xff]
    %v166 = vld [vmem:[#allocation4 + $0x80] sm:$0xff]
    %v167 = vld [vmem:[#allocation4 + $0x88] sm:$0xff]
    %v168 = vld [vmem:[#allocation4 + $0x90] sm:$0xff]
    %v169 = vld [vmem:[#allocation4 + $0x98] sm:$0xff]
    %v170 = vld [vmem:[#allocation4 + $0xa0] sm:$0xff]
    %v171 = vld [vmem:[#allocation4 + $0xa8] sm:$0xff]
    %v172 = vld [vmem:[#allocation4 + $0xb0] sm:$0xff]
    %v173 = vld [vmem:[#allocation4 + $0xb8] sm:$0xff]
    %v174 = vld [vmem:[#allocation4 + $0xc0] sm:$0xff]
    %v175 = vld [vmem:[#allocation4 + $0xc8] sm:$0xff]
    %v176 = vld [vmem:[#allocation4 + $0xd0] sm:$0xff]
    %v177 = vld [vmem:[#allocation4 + $0xd8] sm:$0xff]
    %v178 = vld [vmem:[#allocation4 + $0xe0] sm:$0xff]
    %v179 = vld [vmem:[#allocation4 + $0xe8] sm:$0xff]
    %v180 = vld [vmem:[#allocation4 + $0xf0] sm:$0xff]
    %v181 = vld [vmem:[#allocation4 + $0xf8] sm:$0xff]
    %v182 = vld [vmem:[#allocation4 + $0x100] sm:$0xff]
    %v183 = vld [vmem:[#allocation4 + $0x108] sm:$0xff]
    %v184 = vld [vmem:[#allocation4 + $0x110] sm:$0xff]
    %v185 = vld [vmem:[#allocation4 + $0x118] sm:$0xff]
    %v186 = vld [vmem:[#allocation4 + $0x120] sm:$0xff]
    %v187 = vld [vmem:[#allocation4 + $0x128] sm:$0xff]
    %v188 = vld [vmem:[#allocation4 + $0x130] sm:$0xff]
    %v189 = vld [vmem:[#allocation4 + $0x138] sm:$0xff]
    %v190 = vld [vmem:[#allocation4 + $0x140] sm:$0xff]
    %v191 = vld [vmem:[#allocation4 + $0x148] sm:$0xff]
    %v192 = vld [vmem:[#allocation4 + $0x150] sm:$0xff]
    %v193 = vld [vmem:[#allocation4 + $0x158] sm:$0xff]
    %v194 = vld [vmem:[#allocation4 + $0x160] sm:$0xff]
    %v195 = vld [vmem:[#allocation4 + $0x168] sm:$0xff]
    %v196 = vld [vmem:[#allocation4 + $0x170] sm:$0xff]
    %v197 = vld [vmem:[#allocation4 + $0x178] sm:$0xff]
    %v198 = vld [vmem:[%s4] sm:$0x7]
    %v200 = vlaneseq
    %v201 = vshrl.u32 %v200, 7
    %v202 = vsub.s32 0, %v201
    %v203 = vrot.slane %v198, %v202
    %v204 = vlaneseq
    %v205 = vshrl.u32 %v204, 7
    %v206 = vsub.s32 1, %v205
    %v207 = vrot.slane %v198, %v206
    %v208 = vlaneseq
    %v209 = vshrl.u32 %v208, 7
    %v210 = vsub.s32 2, %v209
    %v211 = vrot.slane %v198, %v210
    %215 = vmatprep.subr.mxu0 %v196
    %216 = vmatpush1.msra.mxu0 %v195
    %217 = vmatprep.subr.mxu0 %v193
    %218 = vmatpush1.msra.mxu0 %v192
    %219 = vmatprep.subr.mxu0 %v190
    %220 = vmatpush1.msra.mxu0 %v189
    %221 = vmatprep.subr.mxu0 %v187
    %222 = vmatpush1.msra.mxu0 %v186
    %223 = vmatprep.subr.mxu0 %v184
    %224 = vmatpush1.msra.mxu0 %v183
    %225 = vmatprep.subr.mxu0 %v181
    %226 = vmatpush1.msra.mxu0 %v180
    %227 = vmatprep.subr.mxu0 %v178
    %228 = vmatpush1.msra.mxu0 %v177
    %229 = vmatprep.subr.mxu0 %v175
    %230 = vmatpush1.msra.mxu0 %v174
    %231 = vmatprep.subr.mxu0 %v172
    %232 = vmatpush1.msra.mxu0 %v171
    %233 = vmatprep.subr.mxu0 %v169
    %234 = vmatpush1.msra.mxu0 %v168
    %235 = vmatprep.subr.mxu0 %v166
    %236 = vmatpush1.msra.mxu0 %v165
    %237 = vmatprep.subr.mxu0 %v163
    %238 = vmatpush1.msra.mxu0 %v162
    %239 = vmatprep.subr.mxu0 %v160
    %240 = vmatpush1.msra.mxu0 %v159
    %241 = vmatprep.subr.mxu0 %v157
    %242 = vmatpush1.msra.mxu0 %v156
    %243 = vmatprep.subr.mxu0 %v154
    %244 = vmatpush1.msra.mxu0 %v153
    %245 = vmatprep.subr.mxu0 %v151
    %246 = vmatpush1.msra.mxu0 %v150
    %247 = vmatprep.subr.mxu0 0.0
    %248 = vmatpush2.msra.mxu0 0.0
    %249 = vmatprep.subr.mxu0 0.0
    %250 = vmatpush2.msra.mxu0 0.0
    %251 = vmatprep.subr.mxu0 0.0
    %252 = vmatpush2.msra.mxu0 0.0
    %253 = vmatprep.subr.mxu0 0.0
    %254 = vmatpush2.msra.mxu0 0.0
    %255 = vmatprep.subr.mxu0 0.0
    %256 = vmatpush2.msra.mxu0 0.0
    %257 = vmatprep.subr.mxu0 0.0
    %258 = vmatpush2.msra.mxu0 0.0
    %259 = vmatprep.subr.mxu0 0.0
    %260 = vmatpush2.msra.mxu0 0.0
    %261 = vmatprep.subr.mxu0 0.0
    %262 = vmatpush2.msra.mxu0 0.0
    %263 = vmatprep.subr.mxu0 0.0
    %264 = vmatpush2.msra.mxu0 0.0
    %265 = vmatprep.subr.mxu0 0.0
    %266 = vmatpush2.msra.mxu0 0.0
    %267 = vmatprep.subr.mxu0 0.0
    %268 = vmatpush2.msra.mxu0 0.0
    %269 = vmatprep.subr.mxu0 0.0
    %270 = vmatpush2.msra.mxu0 0.0
    %271 = vmatprep.subr.mxu0 0.0
    %272 = vmatpush2.msra.mxu0 0.0
    %273 = vmatprep.subr.mxu0 0.0
    %274 = vmatpush2.msra.mxu0 0.0
    %275 = vmatprep.subr.mxu0 0.0
    %276 = vmatpush2.msra.mxu0 0.0
    %277 = vmatprep.subr.mxu0 0.0
    %278 = vmatpush2.msra.mxu0 0.0
    %279 = vmatprep.mubr.f32.mxu0 0.0
    %280 = vmatmul.mubr.f32.gmra.mxu0 %v149
    %v281 = vpop.f32.mrf.mxu0
    %v282 = vadd.f32 %v203, %v281
    %v283 = vpop.f32.mrf.mxu0
    %v284 = vadd.f32 %v207, %v283
    %285 = vdwg.mxu0
    %286 = vmatprep.subr.mxu0 0.0
    %287 = vmatpush1.msra.mxu0 %v197
    %288 = vmatprep.subr.mxu0 0.0
    %289 = vmatpush1.msra.mxu0 %v194
    %290 = vmatprep.subr.mxu0 0.0
    %291 = vmatpush1.msra.mxu0 %v191
    %292 = vmatprep.subr.mxu0 0.0
    %293 = vmatpush1.msra.mxu0 %v188
    %294 = vmatprep.subr.mxu0 0.0
    %295 = vmatpush1.msra.mxu0 %v185
    %296 = vmatprep.subr.mxu0 0.0
    %297 = vmatpush1.msra.mxu0 %v182
    %298 = vmatprep.subr.mxu0 0.0
    %299 = vmatpush1.msra.mxu0 %v179
    %300 = vmatprep.subr.mxu0 0.0
    %301 = vmatpush1.msra.mxu0 %v176
    %302 = vmatprep.subr.mxu0 0.0
    %303 = vmatpush1.msra.mxu0 %v173
    %304 = vmatprep.subr.mxu0 0.0
    %305 = vmatpush1.msra.mxu0 %v170
    %306 = vmatprep.subr.mxu0 0.0
    %307 = vmatpush1.msra.mxu0 %v167
    %308 = vmatprep.subr.mxu0 0.0
    %309 = vmatpush1.msra.mxu0 %v164
    %310 = vmatprep.subr.mxu0 0.0
    %311 = vmatpush1.msra.mxu0 %v161
    %312 = vmatprep.subr.mxu0 0.0
    %313 = vmatpush1.msra.mxu0 %v158
    %314 = vmatprep.subr.mxu0 0.0
    %315 = vmatpush1.msra.mxu0 %v155
    %316 = vmatprep.subr.mxu0 0.0
    %317 = vmatpush1.msra.mxu0 %v152
    %318 = vmatprep.subr.mxu0 0.0
    %319 = vmatpush2.msra.mxu0 0.0
    %320 = vmatprep.subr.mxu0 0.0
    %321 = vmatpush2.msra.mxu0 0.0
    %322 = vmatprep.subr.mxu0 0.0
    %323 = vmatpush2.msra.mxu0 0.0
    %324 = vmatprep.subr.mxu0 0.0
    %325 = vmatpush2.msra.mxu0 0.0
    %326 = vmatprep.subr.mxu0 0.0
    %327 = vmatpush2.msra.mxu0 0.0
    %328 = vmatprep.subr.mxu0 0.0
    %329 = vmatpush2.msra.mxu0 0.0
    %330 = vmatprep.subr.mxu0 0.0
    %331 = vmatpush2.msra.mxu0 0.0
    %332 = vmatprep.subr.mxu0 0.0
    %333 = vmatpush2.msra.mxu0 0.0
    %334 = vmatprep.subr.mxu0 0.0
    %335 = vmatpush2.msra.mxu0 0.0
    %336 = vmatprep.subr.mxu0 0.0
    %337 = vmatpush2.msra.mxu0 0.0
    %338 = vmatprep.subr.mxu0 0.0
    %339 = vmatpush2.msra.mxu0 0.0
    %340 = vmatprep.subr.mxu0 0.0
    %341 = vmatpush2.msra.mxu0 0.0
    %342 = vmatprep.subr.mxu0 0.0
    %343 = vmatpush2.msra.mxu0 0.0
    %344 = vmatprep.subr.mxu0 0.0
    %345 = vmatpush2.msra.mxu0 0.0
    %346 = vmatprep.subr.mxu0 0.0
    %347 = vmatpush2.msra.mxu0 0.0
    %348 = vmatprep.subr.mxu0 0.0
    %349 = vmatpush2.msra.mxu0 0.0
    %350 = vmatprep.mubr.f32.mxu0 0.0
    %351 = vmatmul.mubr.f32.gmra.mxu0 %v149
    %v352 = vpop.f32.mrf.mxu0
    %v353 = vadd.f32 %v211, %v352
    %v354 = vpop.f32.mrf.mxu0
    %355 = vdwg.mxu0
    %v356 = vlaneseq
    %v357 = vand.u32 %v356, 127
    %vm358 = vcmp.lt.s32.totalorder %v357, 8
    %359 = vst [vmem:[%s5] sm:$0xff] %v282
    %v360 = vsel %vm358, %v282, -inf
    %361 = vmax.xlane.f32.xlu0 %v360
    %v362 = vpop.xlane.xlu0 %361
    %vm363 = vcmp.eq.f32.partialorder %v360, %v362
    %v364 = vsel %vm363, %v357, 128
    %v365 = vand.u32 %v364, 65535
    %v366 = vshra.s32 %v364, 16
    %v367 = vcvt.s32.f32 %v365
    %v368 = vcvt.s32.f32 %v366
    %369 = vmin.xlane.f32.xlu0 %v368
    %v370 = vpop.xlane.xlu0 %369
    %vm371 = vcmp.eq.f32.partialorder %v368, %v370
    %v372 = vsel %vm371, %v367, inf
    %373 = vmin.xlane.f32.xlu0 %v372
    %v374 = vpop.xlane.xlu0 %373
    %v375 = vcvt.f32.s32 %v374
    %v376 = vcvt.f32.s32 %v370
    %v377 = vshll.u32 %v376, 16
    %v378 = vadd.s32 %v377, %v375
    %vm379 = vcmask 7168
    %380 = vst.msk [vmem:[%s6] sm:$0xff] %vm379, %v378
    %381 = vst [vmem:[%s5 + $0x8] sm:$0xff] %v284
    %v382 = vsel %vm358, %v284, -inf
    %383 = vmax.xlane.f32.xlu0 %v382
    %v384 = vpop.xlane.xlu0 %383
    %vm385 = vcmp.eq.f32.partialorder %v382, %v384
    %v386 = vsel %vm385, %v357, 128
    %v387 = vand.u32 %v386, 65535
    %v388 = vshra.s32 %v386, 16
    %v389 = vcvt.s32.f32 %v387
    %v390 = vcvt.s32.f32 %v388
    %391 = vmin.xlane.f32.xlu0 %v390
    %v392 = vpop.xlane.xlu0 %391
    %vm393 = vcmp.eq.f32.partialorder %v390, %v392
    %v394 = vsel %vm393, %v389, inf
    %395 = vmin.xlane.f32.xlu0 %v394
    %v396 = vpop.xlane.xlu0 %395
    %v397 = vcvt.f32.s32 %v396
    %v398 = vcvt.f32.s32 %v392
    %v399 = vshll.u32 %v398, 16
    %v400 = vadd.s32 %v399, %v397
    %401 = vst.msk [vmem:[%s6 + $0x8] sm:$0xff] %vm379, %v400
    %402 = vst [vmem:[%s5 + $0x10] sm:$0xff] %v353
    %v403 = vsel %vm358, %v353, -inf
    %404 = vmax.xlane.f32.xlu0 %v403
    %v405 = vpop.xlane.xlu0 %404
    %vm406 = vcmp.eq.f32.partialorder %v403, %v405
    %v407 = vsel %vm406, %v357, 128
    %v408 = vand.u32 %v407, 65535
    %v409 = vshra.s32 %v407, 16
    %v410 = vcvt.s32.f32 %v408
    %v411 = vcvt.s32.f32 %v409
    %412 = vmin.xlane.f32.xlu0 %v411
    %v413 = vpop.xlane.xlu0 %412
    %vm414 = vcmp.eq.f32.partialorder %v411, %v413
    %v415 = vsel %vm414, %v410, inf
    %416 = vmin.xlane.f32.xlu0 %v415
    %v417 = vpop.xlane.xlu0 %416
    %v418 = vcvt.f32.s32 %v417
    %v419 = vcvt.f32.s32 %v413
    %v420 = vshll.u32 %v419, 16
    %v421 = vadd.s32 %v420, %v418
    %422 = vst.msk [vmem:[%s6 + $0x10] sm:$0xff] %vm379, %v421
    // Predicated region
    $region30: #{fwd.1} parent=1 // pred_check
      _
    $region31: #{fwd.1} parent=1 // pred_check_branch
      %424 = sbr.rel (0) target = $region33
    $region32: #{fwd.1} parent=1 // pred_region
      _
    $region33: #{fwd.1} parent=1 // pred_fallthru
      _
    // Predicated region
    $region34: #{fwd.1} parent=1 // pred_check
      _
    $region35: #{fwd.1} parent=1 // pred_check_branch
      %426 = sbr.rel (0) target = $region37
    $region36: #{fwd.1} parent=1 // pred_region
      _
    $region37: #{fwd.1} parent=1 // pred_fallthru
      _
    // Predicated region
    $region38: #{fwd.1} parent=1 // pred_check
      _
    $region39: #{fwd.1} parent=1 // pred_check_branch
      %428 = sbr.rel (0) target = $region41
    $region40: #{fwd.1} parent=1 // pred_region
      _
    $region41: #{fwd.1} parent=1 // pred_fallthru
      _
    // Predicated region
    $region42: #{fwd.1} parent=1 // pred_check
      _
    $region43: #{fwd.1} parent=1 // pred_check_branch
      %430 = sbr.rel (0) target = $region45
    $region44: #{fwd.1} parent=1 // pred_region
      _
    $region45: #{fwd.1} parent=1 // pred_fallthru
      _
    %431 = vsyncpa [#allocation3], 1
    %432 = vsyncpa [#allocation5], 1

</llo_original>
